<compile_context>
chip_gen: v7x
topology: tpu7x:2x2x1
jax: 0.10.0
libtpu: 0.0.40
codegen_flags: <defaults>
</compile_context>

<pallas_src>
import functools

import jax
import jax.numpy as jnp
from jax.experimental import pallas as pl
from jax.experimental.pallas import tpu as pltpu

_LANE = 512             # lane-dense block width (multiple of 128)
_MAX_TILE_ROWS = 1024   # 1024 x 512 x 4 B = 2 MiB per tile in the two-pass path
_FUSED_MAX_ROWS = 2048  # fused path: <= 2048 x 512 x 4 B = 4 MiB resident block
_VMEM_LIMIT = 32 << 20  # safe scoped-VMEM limit on v5e/v6e/v7x


# --------------------------- fused single-pass path ---------------------------
def _fused_kernel(x_ref, o_ref, *, inv_count):
    """Whole (padded) array resident in VMEM: reduce + scale in one pass."""
    x = x_ref[...].astype(jnp.float32)
    inv_rms = jax.lax.rsqrt(jnp.sum(x * x) * inv_count)
    o_ref[...] = (x_ref[...].astype(jnp.float32) * inv_rms).astype(o_ref.dtype)


# ------------------------------ two-pass path ---------------------------------
def _sumsq_kernel(x_ref, out_ref, acc_ref):
    """Pass 1: global sum of squares.

    acc_ref is a (tile_rows, _LANE) f32 VMEM accumulator resident across the
    sequential grid; each step is a pure-VPU elementwise `acc += x*x`.  The
    XLU cross-lane reduce to a scalar runs once, on the last grid step.
    """
    @pl.when(pl.program_id(0) == 0)
    def _():
        acc_ref[...] = jnp.zeros_like(acc_ref)

    x = x_ref[...].astype(jnp.float32)
    acc_ref[...] += x * x

    @pl.when(pl.program_id(0) == pl.num_programs(0) - 1)
    def _():
        out_ref[0] = jnp.sum(acc_ref[...])


def _scale_kernel(sumsq_ref, x_ref, o_ref, *, inv_count):
    """Pass 2: out = x * rsqrt(mean |z|^2). One scalar rsqrt per tile + VPU mul."""
    inv_rms = jax.lax.rsqrt(sumsq_ref[0] * inv_count)
    o_ref[...] = (x_ref[...].astype(jnp.float32) * inv_rms).astype(o_ref.dtype)


# --------------------------------- wrapper -------------------------------------
def rmsnorm_transformer(x):
    """Pallas implementation of RMSNorm(model='Transformer').forward."""
    B, S, D = x.shape
    assert D % 2 == 0, "last dim must be even (real/imag interleave)"
    total = B * S * D
    n_pairs = B * S * (D // 2)  # number of complex pairs averaged in the mean
    inv_count = 1.0 / n_pairs

    cols = _LANE
    rows = -(-total // cols)                 # rows needed to cover the input
    rows8 = -(-rows // 8) * 8                # multiple of 8 sublanes

    def _pad_reshape(rows_padded):
        flat = x.reshape(-1)
        padded_total = rows_padded * cols
        if padded_total != total:
            flat = jnp.concatenate(
                [flat, jnp.zeros((padded_total - total,), dtype=flat.dtype)])
        return flat.reshape(rows_padded, cols)

    # ---- Fused path: one HBM read + one HBM write when the block fits VMEM. ----
    if rows8 <= _FUSED_MAX_ROWS:
        x2d = _pad_reshape(rows8)
        fused = functools.partial(_fused_kernel, inv_count=inv_count)
        out2d = pl.pallas_call(
            fused,
            out_shape=jax.ShapeDtypeStruct((rows8, cols), x.dtype),
            grid_spec=pltpu.PrefetchScalarGridSpec(
                num_scalar_prefetch=0,
                grid=(1,),
                in_specs=[pl.BlockSpec((rows8, cols), lambda i: (0, 0))],
                out_specs=pl.BlockSpec((rows8, cols), lambda i: (0, 0))),
            compiler_params=pltpu.CompilerParams(
                dimension_semantics=("arbitrary",),
                vmem_limit_bytes=_VMEM_LIMIT),
        )(x2d)
        return out2d.reshape(-1)[:total].reshape(B, S, D)

    # ---- Two-pass path for large inputs. ----
    tile_rows = _MAX_TILE_ROWS
    rows_padded = -(-rows // tile_rows) * tile_rows
    x2d = _pad_reshape(rows_padded)
    grid = (rows_padded // tile_rows,)

    # Pass 1: global sum of squares (padding zeros contribute nothing).
    sumsq = pl.pallas_call(
        _sumsq_kernel,
        out_shape=jax.ShapeDtypeStruct((1,), jnp.float32),
        grid_spec=pltpu.PrefetchScalarGridSpec(
            num_scalar_prefetch=0,
            grid=grid,
            in_specs=[pl.BlockSpec((tile_rows, cols), lambda i: (i, 0))],
            out_specs=pl.BlockSpec(memory_space=pltpu.SMEM),
            scratch_shapes=[pltpu.VMEM((tile_rows, cols), jnp.float32)]),
        compiler_params=pltpu.CompilerParams(
            dimension_semantics=("arbitrary",),
            vmem_limit_bytes=_VMEM_LIMIT),
    )(x2d)

    # Pass 2: scale every element by rsqrt(sumsq / n_pairs).
    scale_fn = functools.partial(_scale_kernel, inv_count=inv_count)
    out2d = pl.pallas_call(
        scale_fn,
        out_shape=jax.ShapeDtypeStruct((rows_padded, cols), x.dtype),
        grid_spec=pltpu.PrefetchScalarGridSpec(
            num_scalar_prefetch=0,
            grid=grid,
            in_specs=[
                pl.BlockSpec(memory_space=pltpu.SMEM),            # scalar sumsq
                pl.BlockSpec((tile_rows, cols), lambda i: (i, 0)),
            ],
            out_specs=pl.BlockSpec((tile_rows, cols), lambda i: (i, 0))),
        compiler_params=pltpu.CompilerParams(
            dimension_semantics=("parallel",),
            vmem_limit_bytes=_VMEM_LIMIT),
    )(sumsq, x2d)

    return out2d.reshape(-1)[:total].reshape(B, S, D)


def rmsnorm_cnn(x):
    # model == 'CNN' branch of the PyTorch module is an identity pass-through.
    return x


def _reference(x):
    x_real = x[:, :, ::2]
    x_imag = x[:, :, 1::2]
    rms = jnp.sqrt(jnp.mean(x_real * x_real + x_imag * x_imag))
    return x / rms


if __name__ == "__main__":
    key = jax.random.PRNGKey(0)

    # Small shape consistent with the module's (B, S, D) Transformer input.
    B, S, D = 2, 8, 32
    x = jax.random.normal(key, (B, S, D), dtype=jnp.float32)
    out = jax.block_until_ready(rmsnorm_transformer(x))
    ref = _reference(x)
    assert out.shape == x.shape and out.dtype == x.dtype
    assert jnp.allclose(out, ref, atol=1e-5, rtol=1e-5), "mismatch vs reference"

    # Shape that is not a multiple of the tile (exercises the padding path).
    x2 = jax.random.normal(jax.random.PRNGKey(1), (3, 5, 30), dtype=jnp.float32)
    out2 = jax.block_until_ready(rmsnorm_transformer(x2))
    assert jnp.allclose(out2, _reference(x2), atol=1e-5, rtol=1e-5)

    # Medium shape: multi-row fused single-pass path (resident VMEM block).
    x3 = jax.random.normal(jax.random.PRNGKey(2), (1, 512, 512), dtype=jnp.float32)
    out3 = jax.block_until_ready(rmsnorm_transformer(x3))
    assert jnp.allclose(out3, _reference(x3), atol=1e-5, rtol=1e-5)

    # Large shape: two-pass path (resident VMEM accumulator across the grid).
    x4 = jax.random.normal(jax.random.PRNGKey(3), (4, 1024, 512), dtype=jnp.float32)
    out4 = jax.block_until_ready(rmsnorm_transformer(x4))
    assert jnp.allclose(out4, _reference(x4), atol=1e-5, rtol=1e-5)

    # CNN branch sanity check (identity).
    assert jnp.array_equal(rmsnorm_cnn(x), x)

    print("KERNEL_OK")
</pallas_src>

<mosaic_0001>
module attributes {stable_mosaic.version = 11 : i64} {
  func.func @_fused_kernel(%arg0: i32, %arg1: memref<8x512xf32, #tpu.memory_space<vmem>>, %arg2: memref<8x512xf32, #tpu.memory_space<vmem>>) attributes {dimension_semantics = [#tpu.dimension_semantics<arbitrary>], iteration_bounds = array<i64: 1>, scalar_prefetch = 0 : i64, scratch_operands = 0 : i64, tpu.core_type = #tpu.core_type<tc>, window_params = [{pipeline_mode = #tpu.pipeline_mode<synchronous>, transform_indices = @transform_0, window_bounds = array<i64: 8, 512>}, {pipeline_mode = #tpu.pipeline_mode<synchronous>, transform_indices = @transform_1, window_bounds = array<i64: 8, 512>}]} {
    %c0 = arith.constant 0 : index
    %c0_0 = arith.constant 0 : index
    %0 = vector.load %arg1[%c0, %c0_0] : memref<8x512xf32, #tpu.memory_space<vmem>>, vector<8x512xf32>
    %1 = arith.mulf %0, %0 : vector<8x512xf32>
    %2 = vector.shape_cast %1 : vector<8x512xf32> to vector<1x8x512xf32>
    %cst = arith.constant dense<0.000000e+00> : vector<1xf32>
    %3 = vector.multi_reduction <add>, %2, %cst [1, 2] : vector<1x8x512xf32> to vector<1xf32>
    %4 = vector.shape_cast %3 : vector<1xf32> to vector<1x1x1xf32>
    %5 = vector.extract %4[0, 0, 0] : f32 from vector<1x1x1xf32>
    %cst_1 = arith.constant 3.906250e-03 : f32
    %6 = arith.mulf %5, %cst_1 : f32
    %7 = math.rsqrt %6 : f32
    %c0_2 = arith.constant 0 : index
    %c0_3 = arith.constant 0 : index
    %8 = vector.load %arg1[%c0_2, %c0_3] : memref<8x512xf32, #tpu.memory_space<vmem>>, vector<8x512xf32>
    %9 = vector.broadcast %7 : f32 to vector<8x512xf32>
    %10 = arith.mulf %8, %9 : vector<8x512xf32>
    %c0_4 = arith.constant 0 : index
    %c0_5 = arith.constant 0 : index
    %11 = vector.load %arg2[%c0_4, %c0_5] : memref<8x512xf32, #tpu.memory_space<vmem>>, vector<8x512xf32>
    tpu.vector_store %arg2[%c0_4, %c0_5], %10 {strides = array<i32>} : memref<8x512xf32, #tpu.memory_space<vmem>>, vector<8x512xf32>,
    return
  }
  func.func @transform_0(%arg0: i32) -> (i32, i32) {
    %c0_i32 = arith.constant 0 : i32
    %c0_i32_0 = arith.constant 0 : i32
    %c0_i32_1 = arith.constant 0 : i32
    return %c0_i32, %c0_i32_0 : i32, i32
  }
  func.func @transform_1(%arg0: i32) -> (i32, i32) {
    %c0_i32 = arith.constant 0 : i32
    %c0_i32_0 = arith.constant 0 : i32
    %c0_i32_1 = arith.constant 0 : i32
    return %c0_i32, %c0_i32_0 : i32, i32
  }
}

</mosaic_0001>

<llo_original>
// kernel: tpu_custom_call.1
$region0: #{tpu_custom_call.1}
  #allocation0 [shape = 'u32[]', space=smem, size = 0x4, offset = 0x4, fixed_abs, tag = 'smem constant byte address 0x4 - core index']
  #allocation1 [shape = 'u32[144,128]{1,0:T(1,128)}', space=vmem, size = 0x12000, scoped, tag = 'internal scratch']
  %s0 = inlined_call_operand.hbm [shape: f32[8,512], index: 0, kind: input, shape index: {}]
  %s1 = inlined_call_operand.hbm [shape: f32[8,512], index: 1, kind: output, shape index: {}]
  %s2 = sld [smem:[#allocation0]]
  $region18: #{tpu_custom_call.1} parent=0
    _
  %s4 = ssub.s32 1, %s2
  %s5 = scalar_select 0, %s4, %s2
  $region1: #{tpu_custom_call.1} parent=0
    #allocation2 [shape = 'u8[16384]{0}', space=vmem, size = 0x4000, scoped, tag = 'input window, operand 0, single buffered']
    #allocation3 [shape = 's32[1]{0}', space=sflag, size = 0x4, scoped, tag = 'scoped memory for tpu_custom_call.1']
    #allocation4 [shape = 's32[1]{0}', space=sflag, size = 0x4, scoped, tag = 'scoped memory for tpu_custom_call.1']
    #allocation5 [shape = 'u8[16384]{0}', space=vmem, size = 0x4000, scoped, tag = 'output window, operand 0, single buffered']
    %6 = vsyncpa [#allocation3], 0
    %7 = vsyncpa [#allocation4], 0
    // Predicated region
    $region2: #{tpu_custom_call.1} parent=1 // pred_check
      _
    $region3: #{tpu_custom_call.1} parent=1 // pred_check_branch
      %9 = sbr.rel (0) target = $region5
    $region4: #{tpu_custom_call.1} parent=1 // pred_region
      %s11 = ssub.s32 512, 512
      %12 = vsyncadd [#allocation3], %s11
      %s14 = sshll.u32 [#allocation2], 4
      %s15 = int_to_ptr.vmem [resolvable:$true] %s14
      %17 = dma.hbm_to_vmem [thread:$0]  %s0, 512, %s15, [#allocation3]
    $region5: #{tpu_custom_call.1} parent=1 // pred_fallthru
      _
    // Predicated region
    $region6: #{tpu_custom_call.1} parent=1 // pred_check
      _
    $region7: #{tpu_custom_call.1} parent=1 // pred_check_branch
      %19 = sbr.rel (0) target = $region9
    $region8: #{tpu_custom_call.1} parent=1 // pred_region
      %20 = dma.done [#allocation3], 512
    $region9: #{tpu_custom_call.1} parent=1 // pred_fallthru
      _
    %v21 = vld [vmem:[#allocation2] sm:$0xff]
    %v22 = vld [vmem:[#allocation2 + $0x8] sm:$0xff]
    %v23 = vld [vmem:[#allocation2 + $0x10] sm:$0xff]
    %v24 = vld [vmem:[#allocation2 + $0x18] sm:$0xff]
    %v25 = vmul.f32 %v21, %v21
    %v26 = vmul.f32 %v22, %v22
    %v27 = vmul.f32 %v23, %v23
    %v28 = vmul.f32 %v24, %v24
    %v29 = vadd.f32 %v25, %v26
    %v30 = vadd.f32 %v29, %v27
    %v31 = vadd.f32 %v30, %v28
    %32 = vadd.xlane.f32.xlu0 %v31
    %v33 = vpop.xlane.xlu0 %32
    %v34 = vrot.slane %v33, 4
    %v35 = vadd.f32 %v33, %v34
    %v36 = vrot.slane %v35, 2
    %v37 = vadd.f32 %v35, %v36
    %v38 = vrot.slane %v37, 1
    %v39 = vadd.f32 %v37, %v38
    %s40 = vtos %v39
    %s41 = smul.f32 %s40, 0.00390625
    %v42 = vstv %s41
    %v43 = vrsqrt.pop %v42
    %s44 = vtos %v43
    %v45 = vstv %s44
    %v46 = vmul.f32 %v21, %v45
    %v47 = vmul.f32 %v22, %v45
    %v48 = vmul.f32 %v23, %v45
    %v49 = vmul.f32 %v24, %v45
    %50 = vst [vmem:[#allocation5] sm:$0xff] %v46
    %51 = vst [vmem:[#allocation5 + $0x8] sm:$0xff] %v47
    %52 = vst [vmem:[#allocation5 + $0x10] sm:$0xff] %v48
    %53 = vst [vmem:[#allocation5 + $0x18] sm:$0xff] %v49
    // Predicated region
    $region10: #{tpu_custom_call.1} parent=1 // pred_check
      _
    $region11: #{tpu_custom_call.1} parent=1 // pred_check_branch
      %55 = sbr.rel (0) target = $region13
    $region12: #{tpu_custom_call.1} parent=1 // pred_region
      %s57 = ssub.s32 512, 512
      %58 = vsyncadd [#allocation4], %s57
      %s60 = sshll.u32 [#allocation5], 4
      %s61 = int_to_ptr.vmem [resolvable:$true] %s60
      %63 = dma.vmem_to_hbm [thread:$0]  %s61, 512, %s1, [#allocation4]
    $region13: #{tpu_custom_call.1} parent=1 // pred_fallthru
      _
    // Predicated region
    $region14: #{tpu_custom_call.1} parent=1 // pred_check
      _
    $region15: #{tpu_custom_call.1} parent=1 // pred_check_branch
      %65 = sbr.rel (0) target = $region17
    $region16: #{tpu_custom_call.1} parent=1 // pred_region
      %66 = dma.done [#allocation4], 512
    $region17: #{tpu_custom_call.1} parent=1 // pred_fallthru
      _
    %67 = vsyncpa [#allocation3], 1
    %68 = vsyncpa [#allocation4], 1

</llo_original>
